<compile_context>
chip_gen: v7x
topology: tpu7x:2x2x1
jax: 0.10.0
libtpu: 0.0.40
codegen_flags: <defaults>
</compile_context>

<pallas_src>
import jax
import jax.numpy as jnp
from jax.experimental import pallas as pl
from jax.experimental.pallas import tpu as pltpu

IN_DIM = 607      # logical input features (PyTorch nn.Linear(607, 256))
IN_PAD = 640      # 607 zero-padded to a multiple of 128 -> clean MXU K tiles
H1 = 256
H2 = 128
OUT_DIM = 6       # logical number of actions
OUT_PAD = 8       # tiny lane pad (block last dim == full array dim -> legal block)
MAX_TILE_B = 1024 # largest batch tile; amortizes per-grid-step pipeline overhead


def _dqn_kernel(x_ref, w1_ref, b1_ref, w2_ref, b2_ref, w3_ref, b3_ref, o_ref):
    # Layer 1: [TB, 640] @ [640, 256] (bf16 x bf16, f32 accumulation) + bias -> ReLU
    h1 = jnp.dot(x_ref[...], w1_ref[...], preferred_element_type=jnp.float32)
    h1 = jnp.maximum(h1 + b1_ref[...], 0.0)
    # Layer 2: [TB, 256] @ [256, 128] + bias -> ReLU
    h2 = jnp.dot(h1.astype(jnp.bfloat16), w2_ref[...],
                 preferred_element_type=jnp.float32)
    h2 = jnp.maximum(h2 + b2_ref[...], 0.0)
    # Layer 3: [TB, 128] @ [128, 8] + bias  (cols >= 6 are zeros)
    q = jnp.dot(h2.astype(jnp.bfloat16), w3_ref[...],
                preferred_element_type=jnp.float32)
    o_ref[...] = (q + b3_ref[...]).astype(o_ref.dtype)


def prepare_params(params):
    """Pad & cast f32 (in, out)-layout params into the kernel's bf16 padded layout."""
    w1 = jnp.zeros((IN_PAD, H1), jnp.float32).at[:IN_DIM, :].set(params["w1"])
    w3 = jnp.zeros((H2, OUT_PAD), jnp.float32).at[:, :OUT_DIM].set(params["w3"])
    b3 = jnp.zeros((1, OUT_PAD), jnp.float32).at[:, :OUT_DIM].set(params["b3"])
    return {
        "w1": w1.astype(jnp.bfloat16),
        "b1": params["b1"].astype(jnp.float32),
        "w2": params["w2"].astype(jnp.bfloat16),
        "b2": params["b2"].astype(jnp.float32),
        "w3": w3.astype(jnp.bfloat16),
        "b3": b3,
    }


def _choose_tiling(batch):
    """Pick (b_pad, tile_b, num_tiles) for the batch axis."""
    # Small / medium batch: a single grid step, padded only to the bf16 sublane
    # minimum (16 rows). Block shape equals the full (padded) array -> always legal.
    b16 = ((batch + 15) // 16) * 16
    if b16 <= MAX_TILE_B:
        return b16, b16, 1
    # Large batch: tiles as large as possible (<= MAX_TILE_B, multiple of 128) and an
    # even tile count so v7x's two TensorCores both get work on the "parallel" axis.
    num_tiles = pl.cdiv(batch, MAX_TILE_B)
    num_tiles += num_tiles % 2
    tile_b = ((pl.cdiv(batch, num_tiles) + 127) // 128) * 128
    num_tiles = pl.cdiv(batch, tile_b)
    num_tiles += num_tiles % 2
    return num_tiles * tile_b, tile_b, num_tiles


def simple_dqn_forward(x, kparams, valid_actions=None):
    """Pallas forward pass of SimpleDQN.

    x: [B, 607] float32
    kparams: output of prepare_params (padded bf16 weights, f32 biases)
    valid_actions: optional int array of action indices (torch index_select on dim 1)
    """
    B = x.shape[0]
    b_pad, tile_b, num_tiles = _choose_tiling(B)

    # Pad batch -> b_pad and features 607 -> 640 directly in bf16 (half the wrapper
    # HBM traffic of padding in f32 and casting afterwards; fuses better too).
    x_pad = jnp.pad(x.astype(jnp.bfloat16),
                    ((0, b_pad - B), (0, IN_PAD - IN_DIM)))

    # Weight / bias blocks are the full array and always block (0, 0): VMEM-resident
    # for the whole grid (Pallas re-uses the block, no re-fetch per step).
    resident = lambda a: pl.BlockSpec(a.shape, lambda i: (0, 0))

    flops = 2 * b_pad * (IN_PAD * H1 + H1 * H2 + H2 * OUT_PAD)
    bytes_accessed = (
        x_pad.size * x_pad.dtype.itemsize
        + sum(v.size * v.dtype.itemsize for v in kparams.values())
        + b_pad * OUT_PAD * 4
    )

    q = pl.pallas_call(
        _dqn_kernel,
        out_shape=jax.ShapeDtypeStruct((b_pad, OUT_PAD), jnp.float32),
        grid=(num_tiles,),
        in_specs=[
            pl.BlockSpec((tile_b, IN_PAD), lambda i: (i, 0)),
            resident(kparams["w1"]),
            resident(kparams["b1"]),
            resident(kparams["w2"]),
            resident(kparams["b2"]),
            resident(kparams["w3"]),
            resident(kparams["b3"]),
        ],
        out_specs=pl.BlockSpec((tile_b, OUT_PAD), lambda i: (i, 0)),
        compiler_params=pltpu.CompilerParams(
            dimension_semantics=("parallel",)),
        cost_estimate=pl.CostEstimate(
            flops=flops, transcendentals=0, bytes_accessed=bytes_accessed),
    )(x_pad, kparams["w1"], kparams["b1"], kparams["w2"], kparams["b2"],
      kparams["w3"], kparams["b3"])

    # Padded rows (>= B) contain ReLU(bias) garbage by construction; slice them off
    # here and never reduce over the un-sliced slab.
    q = q[:B, :OUT_DIM]
    if valid_actions is not None:
        # Glue: equivalent of torch.index_select(q_values, 1, valid_actions).
        # NOTE: jnp.take clamps out-of-range indices; torch.index_select would raise.
        valid_actions = jnp.asarray(valid_actions, dtype=jnp.int32)
        q = jnp.take(q, valid_actions, axis=1)
    return q


def init_params(key):
    """Deterministic synthetic init (shapes follow nn.Linear(607,256)/(256,128)/(128,6),
    stored transposed as (in, out))."""
    k1, k2, k3, k4, k5, k6 = jax.random.split(key, 6)

    def uni(k, shape, fan_in):
        bound = 1.0 / jnp.sqrt(float(fan_in))
        return jax.random.uniform(k, shape, jnp.float32, -bound, bound)

    return {
        "w1": uni(k1, (IN_DIM, H1), IN_DIM),
        "b1": uni(k2, (1, H1), IN_DIM),
        "w2": uni(k3, (H1, H2), H1),
        "b2": uni(k4, (1, H2), H1),
        "w3": uni(k5, (H2, OUT_DIM), H2),
        "b3": uni(k6, (1, OUT_DIM), H2),
    }


def _reference_forward_bf16(x, kparams, valid_actions=None):
    """Pure-JAX reference with the SAME bf16 casts / padded params as the kernel."""
    xb = jnp.pad(x.astype(jnp.bfloat16),
                 ((0, 0), (0, IN_PAD - IN_DIM))).astype(jnp.float32)
    w1 = kparams["w1"].astype(jnp.float32)
    w2 = kparams["w2"].astype(jnp.float32)
    w3 = kparams["w3"].astype(jnp.float32)
    h1 = jnp.maximum(xb @ w1 + kparams["b1"], 0.0)
    h2 = jnp.maximum(h1.astype(jnp.bfloat16).astype(jnp.float32) @ w2 + kparams["b2"], 0.0)
    q = h2.astype(jnp.bfloat16).astype(jnp.float32) @ w3 + kparams["b3"]
    q = q[:, :OUT_DIM]
    if valid_actions is not None:
        q = jnp.take(q, jnp.asarray(valid_actions, jnp.int32), axis=1)
    return q


def _reference_forward_f32(x, params, valid_actions=None):
    """Full-precision reference (matches the PyTorch fp32 module)."""
    h1 = jnp.maximum(x @ params["w1"] + params["b1"], 0.0)
    h2 = jnp.maximum(h1 @ params["w2"] + params["b2"], 0.0)
    q = h2 @ params["w3"] + params["b3"]
    if valid_actions is not None:
        q = jnp.take(q, jnp.asarray(valid_actions, jnp.int32), axis=1)
    return q


if __name__ == "__main__":
    key = jax.random.PRNGKey(0)
    k_params, k_x = jax.random.split(key)
    params = init_params(k_params)
    kparams = prepare_params(params)

    B = 2
    x = jax.random.normal(k_x, (B, IN_DIM), dtype=jnp.float32)

    # Full Q-values path.
    q = jax.block_until_ready(simple_dqn_forward(x, kparams))

    # valid_actions path (index_select on action axis).
    valid_actions = jnp.array([0, 2, 5], dtype=jnp.int32)
    q_sel = jax.block_until_ready(simple_dqn_forward(x, kparams, valid_actions))

    # Sanity checks: exact-dtype reference (tight) and fp32 reference (bf16-drift bound).
    q_ref = _reference_forward_bf16(x, kparams)
    q_sel_ref = _reference_forward_bf16(x, kparams, valid_actions)
    q_ref_f32 = _reference_forward_f32(x, params)
    assert q.shape == (B, OUT_DIM)
    assert q_sel.shape == (B, 3)
    assert jnp.allclose(q, q_ref, atol=1e-2, rtol=1e-2)
    assert jnp.allclose(q_sel, q_sel_ref, atol=1e-2, rtol=1e-2)
    assert jnp.allclose(q, q_ref_f32, atol=5e-2, rtol=5e-2)  # bf16 vs fp32 parity bound

    print("KERNEL_OK")
</pallas_src>

<mosaic_0001>
module attributes {stable_mosaic.version = 11 : i64} {
  func.func @_dqn_kernel(%arg0: i32, %arg1: memref<16x640xbf16, #tpu.memory_space<vmem>>, %arg2: memref<640x256xbf16, #tpu.memory_space<vmem>>, %arg3: memref<1x256xf32, #tpu.memory_space<vmem>>, %arg4: memref<256x128xbf16, #tpu.memory_space<vmem>>, %arg5: memref<1x128xf32, #tpu.memory_space<vmem>>, %arg6: memref<128x8xbf16, #tpu.memory_space<vmem>>, %arg7: memref<1x8xf32, #tpu.memory_space<vmem>>, %arg8: memref<16x8xf32, #tpu.memory_space<vmem>>) attributes {dimension_semantics = [#tpu.dimension_semantics<parallel>], iteration_bounds = array<i64: 1>, scalar_prefetch = 0 : i64, scratch_operands = 0 : i64, tpu.core_type = #tpu.core_type<tc>, window_params = [{transform_indices = @transform_0, window_bounds = array<i64: 16, 640>}, {pipeline_mode = #tpu.pipeline_mode<synchronous>, transform_indices = @transform_1, window_bounds = array<i64: 640, 256>}, {pipeline_mode = #tpu.pipeline_mode<synchronous>, transform_indices = @transform_2, window_bounds = array<i64: 1, 256>}, {pipeline_mode = #tpu.pipeline_mode<synchronous>, transform_indices = @transform_3, window_bounds = array<i64: 256, 128>}, {pipeline_mode = #tpu.pipeline_mode<synchronous>, transform_indices = @transform_4, window_bounds = array<i64: 1, 128>}, {pipeline_mode = #tpu.pipeline_mode<synchronous>, transform_indices = @transform_5, window_bounds = array<i64: 128, 8>}, {pipeline_mode = #tpu.pipeline_mode<synchronous>, transform_indices = @transform_6, window_bounds = array<i64: 1, 8>}, {transform_indices = @transform_7, window_bounds = array<i64: 16, 8>}]} {
    %c0 = arith.constant 0 : index
    %c0_0 = arith.constant 0 : index
    %0 = vector.load %arg1[%c0, %c0_0] : memref<16x640xbf16, #tpu.memory_space<vmem>>, vector<16x640xbf16>
    %c0_1 = arith.constant 0 : index
    %c0_2 = arith.constant 0 : index
    %1 = vector.load %arg2[%c0_1, %c0_2] : memref<640x256xbf16, #tpu.memory_space<vmem>>, vector<640x256xbf16>
    %cst = arith.constant dense<0.000000e+00> : vector<16x256xf32>
    %2 = tpu.matmul %0, %1, %cst {dimension_numbers = #tpu.dot_dimension_numbers<[1], [0], [0], [1], [0, 0, 1, 1], [], []>} : vector<16x640xbf16>, vector<640x256xbf16>, vector<16x256xf32> -> vector<16x256xf32>
    %c0_3 = arith.constant 0 : index
    %c0_4 = arith.constant 0 : index
    %3 = vector.load %arg3[%c0_3, %c0_4] : memref<1x256xf32, #tpu.memory_space<vmem>>, vector<1x256xf32>
    %4 = vector.broadcast %3 : vector<1x256xf32> to vector<16x256xf32>
    %5 = arith.addf %2, %4 : vector<16x256xf32>
    %cst_5 = arith.constant 0.000000e+00 : f32
    %6 = vector.broadcast %cst_5 : f32 to vector<16x256xf32>
    %7 = arith.maximumf %5, %6 : vector<16x256xf32>
    %8 = arith.truncf %7 : vector<16x256xf32> to vector<16x256xbf16>
    %c0_6 = arith.constant 0 : index
    %c0_7 = arith.constant 0 : index
    %9 = vector.load %arg4[%c0_6, %c0_7] : memref<256x128xbf16, #tpu.memory_space<vmem>>, vector<256x128xbf16>
    %cst_8 = arith.constant dense<0.000000e+00> : vector<16x128xf32>
    %10 = tpu.matmul %8, %9, %cst_8 {dimension_numbers = #tpu.dot_dimension_numbers<[1], [0], [0], [1], [0, 0, 1, 1], [], []>} : vector<16x256xbf16>, vector<256x128xbf16>, vector<16x128xf32> -> vector<16x128xf32>
    %c0_9 = arith.constant 0 : index
    %c0_10 = arith.constant 0 : index
    %11 = vector.load %arg5[%c0_9, %c0_10] : memref<1x128xf32, #tpu.memory_space<vmem>>, vector<1x128xf32>
    %12 = vector.broadcast %11 : vector<1x128xf32> to vector<16x128xf32>
    %13 = arith.addf %10, %12 : vector<16x128xf32>
    %cst_11 = arith.constant 0.000000e+00 : f32
    %14 = vector.broadcast %cst_11 : f32 to vector<16x128xf32>
    %15 = arith.maximumf %13, %14 : vector<16x128xf32>
    %16 = arith.truncf %15 : vector<16x128xf32> to vector<16x128xbf16>
    %c0_12 = arith.constant 0 : index
    %c0_13 = arith.constant 0 : index
    %17 = vector.load %arg6[%c0_12, %c0_13] : memref<128x8xbf16, #tpu.memory_space<vmem>>, vector<128x8xbf16>
    %cst_14 = arith.constant dense<0.000000e+00> : vector<16x8xf32>
    %18 = tpu.matmul %16, %17, %cst_14 {dimension_numbers = #tpu.dot_dimension_numbers<[1], [0], [0], [1], [0, 0, 1, 1], [], []>} : vector<16x128xbf16>, vector<128x8xbf16>, vector<16x8xf32> -> vector<16x8xf32>
    %c0_15 = arith.constant 0 : index
    %c0_16 = arith.constant 0 : index
    %19 = vector.load %arg7[%c0_15, %c0_16] : memref<1x8xf32, #tpu.memory_space<vmem>>, vector<1x8xf32>
    %20 = vector.broadcast %19 : vector<1x8xf32> to vector<16x8xf32>
    %21 = arith.addf %18, %20 : vector<16x8xf32>
    %c0_17 = arith.constant 0 : index
    %c0_18 = arith.constant 0 : index
    %22 = vector.load %arg8[%c0_17, %c0_18] : memref<16x8xf32, #tpu.memory_space<vmem>>, vector<16x8xf32>
    tpu.vector_store %arg8[%c0_17, %c0_18], %21 {strides = array<i32>} : memref<16x8xf32, #tpu.memory_space<vmem>>, vector<16x8xf32>,
    return
  }
  func.func @transform_0(%arg0: i32) -> (i32, i32) {
    %c0_i32 = arith.constant 0 : i32
    %c0_i32_0 = arith.constant 0 : i32
    return %arg0, %c0_i32 : i32, i32
  }
  func.func @transform_1(%arg0: i32) -> (i32, i32) {
    %c0_i32 = arith.constant 0 : i32
    %c0_i32_0 = arith.constant 0 : i32
    %c0_i32_1 = arith.constant 0 : i32
    return %c0_i32, %c0_i32_0 : i32, i32
  }
  func.func @transform_2(%arg0: i32) -> (i32, i32) {
    %c0_i32 = arith.constant 0 : i32
    %c0_i32_0 = arith.constant 0 : i32
    %c0_i32_1 = arith.constant 0 : i32
    return %c0_i32, %c0_i32_0 : i32, i32
  }
  func.func @transform_3(%arg0: i32) -> (i32, i32) {
    %c0_i32 = arith.constant 0 : i32
    %c0_i32_0 = arith.constant 0 : i32
    %c0_i32_1 = arith.constant 0 : i32
    return %c0_i32, %c0_i32_0 : i32, i32
  }
  func.func @transform_4(%arg0: i32) -> (i32, i32) {
    %c0_i32 = arith.constant 0 : i32
    %c0_i32_0 = arith.constant 0 : i32
    %c0_i32_1 = arith.constant 0 : i32
    return %c0_i32, %c0_i32_0 : i32, i32
  }
  func.func @transform_5(%arg0: i32) -> (i32, i32) {
    %c0_i32 = arith.constant 0 : i32
    %c0_i32_0 = arith.constant 0 : i32
    %c0_i32_1 = arith.constant 0 : i32
    return %c0_i32, %c0_i32_0 : i32, i32
  }
  func.func @transform_6(%arg0: i32) -> (i32, i32) {
    %c0_i32 = arith.constant 0 : i32
    %c0_i32_0 = arith.constant 0 : i32
    %c0_i32_1 = arith.constant 0 : i32
    return %c0_i32, %c0_i32_0 : i32, i32
  }
  func.func @transform_7(%arg0: i32) -> (i32, i32) {
    %c0_i32 = arith.constant 0 : i32
    %c0_i32_0 = arith.constant 0 : i32
    return %arg0, %c0_i32 : i32, i32
  }
}

</mosaic_0001>

<llo_original>
// kernel: tpu_custom_call.1
$region0: #{tpu_custom_call.1}
  #allocation0 [shape = 'u32[]', space=smem, size = 0x4, offset = 0x4, fixed_abs, tag = 'smem constant byte address 0x4 - core index']
  #allocation1 [shape = 'u32[144,128]{1,0:T(1,128)}', space=vmem, size = 0x12000, scoped, tag = 'internal scratch']
  %s0 = inlined_call_operand.vmem [shape: bf16[16,640], index: 0, kind: input, shape index: {}]
  %s1 = inlined_call_operand.hbm [shape: bf16[640,256], index: 1, kind: input, shape index: {}]
  %s2 = inlined_call_operand.vmem [shape: f32[1,256], index: 2, kind: input, shape index: {}]
  %s3 = inlined_call_operand.hbm [shape: bf16[256,128], index: 3, kind: input, shape index: {}]
  %s4 = inlined_call_operand.vmem [shape: f32[1,128], index: 4, kind: input, shape index: {}]
  %s5 = inlined_call_operand.vmem [shape: bf16[128,8], index: 5, kind: input, shape index: {}]
  %s6 = inlined_call_operand.vmem [shape: f32[1,8], index: 6, kind: input, shape index: {}]
  %s7 = inlined_call_operand.vmem [shape: f32[16,8], index: 7, kind: output, shape index: {}]
  %s8 = sld [smem:[#allocation0]]
  $region46: #{tpu_custom_call.1} parent=0
    _
  %s10 = ssub.s32 1, %s8
  %s11 = scalar_select 0, %s10, %s8
  $region1: #{tpu_custom_call.1} parent=0
    #allocation2 [shape = 'u8[327680]{0}', space=vmem, size = 0x50000, scoped, tag = 'input window, operand 1, single buffered']
    #allocation3 [shape = 's32[1]{0}', space=sflag, size = 0x4, scoped, tag = 'scoped memory for tpu_custom_call.1']
    #allocation4 [shape = 'u8[65536]{0}', space=vmem, size = 0x10000, scoped, tag = 'input window, operand 3, single buffered']
    #allocation5 [shape = 's32[1]{0}', space=sflag, size = 0x4, scoped, tag = 'scoped memory for tpu_custom_call.1']
    %12 = vsyncpa [#allocation3], 0
    %13 = vsyncpa [#allocation5], 0
    // Predicated region
    $region2: #{tpu_custom_call.1} parent=1 // pred_check
      _
    $region3: #{tpu_custom_call.1} parent=1 // pred_check_branch
      %15 = sbr.rel (0) target = $region5
    $region4: #{tpu_custom_call.1} parent=1 // pred_region
      _
    $region5: #{tpu_custom_call.1} parent=1 // pred_fallthru
      _
    // Predicated region
    $region6: #{tpu_custom_call.1} parent=1 // pred_check
      _
    $region7: #{tpu_custom_call.1} parent=1 // pred_check_branch
      %17 = sbr.rel (0) target = $region9
    $region8: #{tpu_custom_call.1} parent=1 // pred_region
      %s19 = ssub.s32 10240, 10240
      %20 = vsyncadd [#allocation3], %s19
      %s21 = sshll.u32 [#allocation2], 4
      %s22 = int_to_ptr.vmem [resolvable:$true] %s21
      %27 = dma.hbm_to_vmem [thread:$0]  %s1, 10240, %s22, [#allocation3], 128, 128, 8
    $region9: #{tpu_custom_call.1} parent=1 // pred_fallthru
      _
    // Predicated region
    $region10: #{tpu_custom_call.1} parent=1 // pred_check
      _
    $region11: #{tpu_custom_call.1} parent=1 // pred_check_branch
      %29 = sbr.rel (0) target = $region13
    $region12: #{tpu_custom_call.1} parent=1 // pred_region
      _
    $region13: #{tpu_custom_call.1} parent=1 // pred_fallthru
      _
    // Predicated region
    $region14: #{tpu_custom_call.1} parent=1 // pred_check
      _
    $region15: #{tpu_custom_call.1} parent=1 // pred_check_branch
      %31 = sbr.rel (0) target = $region17
    $region16: #{tpu_custom_call.1} parent=1 // pred_region
      %s33 = ssub.s32 2048, 2048
      %34 = vsyncadd [#allocation5], %s33
      %s35 = sshll.u32 [#allocation4], 4
      %s36 = int_to_ptr.vmem [resolvable:$true] %s35
      %41 = dma.hbm_to_vmem [thread:$0]  %s3, 2048, %s36, [#allocation5], 64, 64, 4
    $region17: #{tpu_custom_call.1} parent=1 // pred_fallthru
      _
    // Predicated region
    $region18: #{tpu_custom_call.1} parent=1 // pred_check
      _
    $region19: #{tpu_custom_call.1} parent=1 // pred_check_branch
      %43 = sbr.rel (0) target = $region21
    $region20: #{tpu_custom_call.1} parent=1 // pred_region
      _
    $region21: #{tpu_custom_call.1} parent=1 // pred_fallthru
      _
    // Predicated region
    $region22: #{tpu_custom_call.1} parent=1 // pred_check
      _
    $region23: #{tpu_custom_call.1} parent=1 // pred_check_branch
      %45 = sbr.rel (0) target = $region25
    $region24: #{tpu_custom_call.1} parent=1 // pred_region
      _
    $region25: #{tpu_custom_call.1} parent=1 // pred_fallthru
      _
    // Predicated region
    $region26: #{tpu_custom_call.1} parent=1 // pred_check
      _
    $region27: #{tpu_custom_call.1} parent=1 // pred_check_branch
      %47 = sbr.rel (0) target = $region29
    $region28: #{tpu_custom_call.1} parent=1 // pred_region
      _
    $region29: #{tpu_custom_call.1} parent=1 // pred_fallthru
      _
    // Predicated region
    $region30: #{tpu_custom_call.1} parent=1 // pred_check
      _
    $region31: #{tpu_custom_call.1} parent=1 // pred_check_branch
      %49 = sbr.rel (0) target = $region33
    $region32: #{tpu_custom_call.1} parent=1 // pred_region
      %50 = dma.done [#allocation3], 10240
    $region33: #{tpu_custom_call.1} parent=1 // pred_fallthru
      _
    // Predicated region
    $region34: #{tpu_custom_call.1} parent=1 // pred_check
      _
    $region35: #{tpu_custom_call.1} parent=1 // pred_check_branch
      %52 = sbr.rel (0) target = $region37
    $region36: #{tpu_custom_call.1} parent=1 // pred_region
      %53 = dma.done [#allocation5], 2048
    $region37: #{tpu_custom_call.1} parent=1 // pred_fallthru
      _
    %v55 = vld [vmem:[%s0] sm:$0xff]
    %v56 = vld [vmem:[%s0 + $0x8] sm:$0xff]
    %v57 = vld [vmem:[%s0 + $0x10] sm:$0xf]
    %v58 = vld [vmem:[%s0 + $0x14] sm:$0xff]
    %v59 = vld [vmem:[%s0 + $0x1c] sm:$0xff]
    %v60 = vld [vmem:[%s0 + $0x24] sm:$0xf]
    %v61 = vld [vmem:[#allocation2] sm:$0xff]
    %v62 = vld [vmem:[#allocation2 + $0x8] sm:$0xff]
    %v63 = vld [vmem:[#allocation2 + $0x10] sm:$0xff]
    %v64 = vld [vmem:[#allocation2 + $0x18] sm:$0xff]
    %v65 = vld [vmem:[#allocation2 + $0x20] sm:$0xff]
    %v66 = vld [vmem:[#allocation2 + $0x28] sm:$0xff]
    %v67 = vld [vmem:[#allocation2 + $0x30] sm:$0xff]
    %v68 = vld [vmem:[#allocation2 + $0x38] sm:$0xff]
    %v69 = vld [vmem:[#allocation2 + $0x40] sm:$0xff]
    %v70 = vld [vmem:[#allocation2 + $0x48] sm:$0xff]
    %v71 = vld [vmem:[#allocation2 + $0x50] sm:$0xff]
    %v72 = vld [vmem:[#allocation2 + $0x58] sm:$0xff]
    %v73 = vld [vmem:[#allocation2 + $0x60] sm:$0xff]
    %v74 = vld [vmem:[#allocation2 + $0x68] sm:$0xff]
    %v75 = vld [vmem:[#allocation2 + $0x70] sm:$0xff]
    %v76 = vld [vmem:[#allocation2 + $0x78] sm:$0xff]
    %v77 = vld [vmem:[#allocation2 + $0x80] sm:$0xff]
    %v78 = vld [vmem:[#allocation2 + $0x88] sm:$0xff]
    %v79 = vld [vmem:[#allocation2 + $0x90] sm:$0xff]
    %v80 = vld [vmem:[#allocation2 + $0x98] sm:$0xff]
    %v81 = vld [vmem:[#allocation2 + $0xa0] sm:$0xff]
    %v82 = vld [vmem:[#allocation2 + $0xa8] sm:$0xff]
    %v83 = vld [vmem:[#allocation2 + $0xb0] sm:$0xff]
    %v84 = vld [vmem:[#allocation2 + $0xb8] sm:$0xff]
    %v85 = vld [vmem:[#allocation2 + $0xc0] sm:$0xff]
    %v86 = vld [vmem:[#allocation2 + $0xc8] sm:$0xff]
    %v87 = vld [vmem:[#allocation2 + $0xd0] sm:$0xff]
    %v88 = vld [vmem:[#allocation2 + $0xd8] sm:$0xff]
    %v89 = vld [vmem:[#allocation2 + $0xe0] sm:$0xff]
    %v90 = vld [vmem:[#allocation2 + $0xe8] sm:$0xff]
    %v91 = vld [vmem:[#allocation2 + $0xf0] sm:$0xff]
    %v92 = vld [vmem:[#allocation2 + $0xf8] sm:$0xff]
    %v93 = vld [vmem:[#allocation2 + $0x100] sm:$0xff]
    %v94 = vld [vmem:[#allocation2 + $0x108] sm:$0xff]
    %v95 = vld [vmem:[#allocation2 + $0x110] sm:$0xff]
    %v96 = vld [vmem:[#allocation2 + $0x118] sm:$0xff]
    %v97 = vld [vmem:[#allocation2 + $0x120] sm:$0xff]
    %v98 = vld [vmem:[#allocation2 + $0x128] sm:$0xff]
    %v99 = vld [vmem:[#allocation2 + $0x130] sm:$0xff]
    %v100 = vld [vmem:[#allocation2 + $0x138] sm:$0xff]
    %v101 = vld [vmem:[#allocation2 + $0x140] sm:$0xff]
    %v102 = vld [vmem:[#allocation2 + $0x148] sm:$0xff]
    %v103 = vld [vmem:[#allocation2 + $0x150] sm:$0xff]
    %v104 = vld [vmem:[#allocation2 + $0x158] sm:$0xff]
    %v105 = vld [vmem:[#allocation2 + $0x160] sm:$0xff]
    %v106 = vld [vmem:[#allocation2 + $0x168] sm:$0xff]
    %v107 = vld [vmem:[#allocation2 + $0x170] sm:$0xff]
    %v108 = vld [vmem:[#allocation2 + $0x178] sm:$0xff]
    %v109 = vld [vmem:[#allocation2 + $0x180] sm:$0xff]
    %v110 = vld [vmem:[#allocation2 + $0x188] sm:$0xff]
    %v111 = vld [vmem:[#allocation2 + $0x190] sm:$0xff]
    %v112 = vld [vmem:[#allocation2 + $0x198] sm:$0xff]
    %v113 = vld [vmem:[#allocation2 + $0x1a0] sm:$0xff]
    %v114 = vld [vmem:[#allocation2 + $0x1a8] sm:$0xff]
    %v115 = vld [vmem:[#allocation2 + $0x1b0] sm:$0xff]
    %v116 = vld [vmem:[#allocation2 + $0x1b8] sm:$0xff]
    %v117 = vld [vmem:[#allocation2 + $0x1c0] sm:$0xff]
    %v118 = vld [vmem:[#allocation2 + $0x1c8] sm:$0xff]
    %v119 = vld [vmem:[#allocation2 + $0x1d0] sm:$0xff]
    %v120 = vld [vmem:[#allocation2 + $0x1d8] sm:$0xff]
    %v121 = vld [vmem:[#allocation2 + $0x1e0] sm:$0xff]
    %v122 = vld [vmem:[#allocation2 + $0x1e8] sm:$0xff]
    %v123 = vld [vmem:[#allocation2 + $0x1f0] sm:$0xff]
    %v124 = vld [vmem:[#allocation2 + $0x1f8] sm:$0xff]
    %v125 = vld [vmem:[#allocation2 + $0x200] sm:$0xff]
    %v126 = vld [vmem:[#allocation2 + $0x208] sm:$0xff]
    %v127 = vld [vmem:[#allocation2 + $0x210] sm:$0xff]
    %v128 = vld [vmem:[#allocation2 + $0x218] sm:$0xff]
    %v129 = vld [vmem:[#allocation2 + $0x220] sm:$0xff]
    %v130 = vld [vmem:[#allocation2 + $0x228] sm:$0xff]
    %v131 = vld [vmem:[#allocation2 + $0x230] sm:$0xff]
    %v132 = vld [vmem:[#allocation2 + $0x238] sm:$0xff]
    %v133 = vld [vmem:[#allocation2 + $0x240] sm:$0xff]
    %v134 = vld [vmem:[#allocation2 + $0x248] sm:$0xff]
    %v135 = vld [vmem:[#allocation2 + $0x250] sm:$0xff]
    %v136 = vld [vmem:[#allocation2 + $0x258] sm:$0xff]
    %v137 = vld [vmem:[#allocation2 + $0x260] sm:$0xff]
    %v138 = vld [vmem:[#allocation2 + $0x268] sm:$0xff]
    %v139 = vld [vmem:[#allocation2 + $0x270] sm:$0xff]
    %v140 = vld [vmem:[#allocation2 + $0x278] sm:$0xff]
    %v141 = vld [vmem:[%s2] sm:$0x3]
    %v143 = vlaneseq
    %v144 = vshrl.u32 %v143, 7
    %v145 = vsub.s32 0, %v144
    %v146 = vrot.slane %v141, %v145
    %v147 = vlaneseq
    %v148 = vshrl.u32 %v147, 7
    %v149 = vsub.s32 1, %v148
    %v150 = vrot.slane %v141, %v149
    %v159 = vunpack.c.l.b16 %v55
    %v160 = vunpack.c.h.b16 %v55
    %v161 = vunpack.c.l.b16 %v56
    %v162 = vunpack.c.h.b16 %v56
    %v163 = vunpack.c.l.b16 %v57
    %v164 = vunpack.c.l.b16 %v58
    %v165 = vunpack.c.h.b16 %v58
    %v166 = vunpack.c.l.b16 %v59
    %v167 = vunpack.c.h.b16 %v59
    %v168 = vunpack.c.l.b16 %v60
    %v169 = vpack.c.b16 %v164, %v159
    %v170 = vpack.c.b16 %v165, %v160
    %v171 = vpack.c.b16 %v166, %v161
    %v172 = vpack.c.b16 %v167, %v162
    %v173 = vpack.c.b16 %v168, %v163
    %v259 = vunpack.c.l.b16 %v61
    %v260 = vunpack.c.h.b16 %v61
    %v261 = vunpack.c.l.b16 %v62
    %v262 = vunpack.c.h.b16 %v62
    %v263 = vunpack.c.l.b16 %v63
    %v264 = vunpack.c.h.b16 %v63
    %v265 = vunpack.c.l.b16 %v64
    %v266 = vunpack.c.h.b16 %v64
    %v267 = vunpack.c.l.b16 %v65
    %v268 = vunpack.c.h.b16 %v65
    %v269 = vunpack.c.l.b16 %v66
    %v270 = vunpack.c.h.b16 %v66
    %v271 = vunpack.c.l.b16 %v67
    %v272 = vunpack.c.h.b16 %v67
    %v273 = vunpack.c.l.b16 %v68
    %v274 = vunpack.c.h.b16 %v68
    %v275 = vunpack.c.l.b16 %v69
    %v276 = vunpack.c.h.b16 %v69
    %v277 = vunpack.c.l.b16 %v70
    %v278 = vunpack.c.h.b16 %v70
    %v279 = vunpack.c.l.b16 %v71
    %v280 = vunpack.c.h.b16 %v71
    %v281 = vunpack.c.l.b16 %v72
    %v282 = vunpack.c.h.b16 %v72
    %v283 = vunpack.c.l.b16 %v73
    %v284 = vunpack.c.h.b16 %v73
    %v285 = vunpack.c.l.b16 %v74
    %v286 = vunpack.c.h.b16 %v74
    %v287 = vunpack.c.l.b16 %v75
    %v288 = vunpack.c.h.b16 %v75
    %v289 = vunpack.c.l.b16 %v76
    %v290 = vunpack.c.h.b16 %v76
    %v291 = vunpack.c.l.b16 %v77
    %v292 = vunpack.c.h.b16 %v77
    %v293 = vunpack.c.l.b16 %v78
    %v294 = vunpack.c.h.b16 %v78
    %v295 = vunpack.c.l.b16 %v79
    %v296 = vunpack.c.h.b16 %v79
    %v297 = vunpack.c.l.b16 %v80
    %v298 = vunpack.c.h.b16 %v80
    %v299 = vunpack.c.l.b16 %v81
    %v300 = vunpack.c.h.b16 %v81
    %v301 = vunpack.c.l.b16 %v82
    %v302 = vunpack.c.h.b16 %v82
    %v303 = vunpack.c.l.b16 %v83
    %v304 = vunpack.c.h.b16 %v83
    %v305 = vunpack.c.l.b16 %v84
    %v306 = vunpack.c.h.b16 %v84
    %v307 = vunpack.c.l.b16 %v85
    %v308 = vunpack.c.h.b16 %v85
    %v309 = vunpack.c.l.b16 %v86
    %v310 = vunpack.c.h.b16 %v86
    %v311 = vunpack.c.l.b16 %v87
    %v312 = vunpack.c.h.b16 %v87
    %v313 = vunpack.c.l.b16 %v88
    %v314 = vunpack.c.h.b16 %v88
    %v315 = vunpack.c.l.b16 %v89
    %v316 = vunpack.c.h.b16 %v89
    %v317 = vunpack.c.l.b16 %v90
    %v318 = vunpack.c.h.b16 %v90
    %v319 = vunpack.c.l.b16 %v91
    %v320 = vunpack.c.h.b16 %v91
    %v321 = vunpack.c.l.b16 %v92
    %v322 = vunpack.c.h.b16 %v92
    %v323 = vunpack.c.l.b16 %v93
    %v324 = vunpack.c.h.b16 %v93
    %v325 = vunpack.c.l.b16 %v94
    %v326 = vunpack.c.h.b16 %v94
    %v327 = vunpack.c.l.b16 %v95
    %v328 = vunpack.c.h.b16 %v95
    %v329 = vunpack.c.l.b16 %v96
    %v330 = vunpack.c.h.b16 %v96
    %v331 = vunpack.c.l.b16 %v97
    %v332 = vunpack.c.h.b16 %v97
    %v333 = vunpack.c.l.b16 %v98
    %v334 = vunpack.c.h.b16 %v98
    %v335 = vunpack.c.l.b16 %v99
    %v336 = vunpack.c.h.b16 %v99
    %v337 = vunpack.c.l.b16 %v100
    %v338 = vunpack.c.h.b16 %v100
    %v339 = vunpack.c.l.b16 %v101
    %v340 = vunpack.c.h.b16 %v101
    %v341 = vunpack.c.l.b16 %v102
    %v342 = vunpack.c.h.b16 %v102
    %v343 = vunpack.c.l.b16 %v103
    %v344 = vunpack.c.h.b16 %v103
    %v345 = vunpack.c.l.b16 %v104
    %v346 = vunpack.c.h.b16 %v104
    %v347 = vunpack.c.l.b16 %v105
    %v348 = vunpack.c.h.b16 %v105
    %v349 = vunpack.c.l.b16 %v106
    %v350 = vunpack.c.h.b16 %v106
    %v351 = vunpack.c.l.b16 %v107
    %v352 = vunpack.c.h.b16 %v107
    %v353 = vunpack.c.l.b16 %v108
    %v354 = vunpack.c.h.b16 %v108
    %v355 = vunpack.c.l.b16 %v109
    %v356 = vunpack.c.h.b16 %v109
    %v357 = vunpack.c.l.b16 %v110
    %v358 = vunpack.c.h.b16 %v110
    %v359 = vunpack.c.l.b16 %v111
    %v360 = vunpack.c.h.b16 %v111
    %v361 = vunpack.c.l.b16 %v112
    %v362 = vunpack.c.h.b16 %v112
    %v363 = vunpack.c.l.b16 %v113
    %v364 = vunpack.c.h.b16 %v113
    %v365 = vunpack.c.l.b16 %v114
    %v366 = vunpack.c.h.b16 %v114
    %v367 = vunpack.c.l.b16 %v115
    %v368 = vunpack.c.h.b16 %v115
    %v369 = vunpack.c.l.b16 %v116
    %v370 = vunpack.c.h.b16 %v116
    %v371 = vunpack.c.l.b16 %v117
    %v372 = vunpack.c.h.b16 %v117
    %v373 = vunpack.c.l.b16 %v118
    %v374 = vunpack.c.h.b16 %v118
    %v375 = vunpack.c.l.b16 %v119
    %v376 = vunpack.c.h.b16 %v119
    %v377 = vunpack.c.l.b16 %v120
    %v378 = vunpack.c.h.b16 %v120
    %v379 = vunpack.c.l.b16 %v121
    %v380 = vunpack.c.h.b16 %v121
    %v381 = vunpack.c.l.b16 %v122
    %v382 = vunpack.c.h.b16 %v122
    %v383 = vunpack.c.l.b16 %v123
    %v384 = vunpack.c.h.b16 %v123
    %v385 = vunpack.c.l.b16 %v124
    %v386 = vunpack.c.h.b16 %v124
    %v387 = vunpack.c.l.b16 %v125
    %v388 = vunpack.c.h.b16 %v125
    %v389 = vunpack.c.l.b16 %v126
    %v390 = vunpack.c.h.b16 %v126
    %v391 = vunpack.c.l.b16 %v127
    %v392 = vunpack.c.h.b16 %v127
    %v393 = vunpack.c.l.b16 %v128
    %v394 = vunpack.c.h.b16 %v128
    %v395 = vunpack.c.l.b16 %v129
    %v396 = vunpack.c.h.b16 %v129
    %v397 = vunpack.c.l.b16 %v130
    %v398 = vunpack.c.h.b16 %v130
    %v399 = vunpack.c.l.b16 %v131
    %v400 = vunpack.c.h.b16 %v131
    %v401 = vunpack.c.l.b16 %v132
    %v402 = vunpack.c.h.b16 %v132
    %v403 = vunpack.c.l.b16 %v133
    %v404 = vunpack.c.h.b16 %v133
    %v405 = vunpack.c.l.b16 %v134
    %v406 = vunpack.c.h.b16 %v134
    %v407 = vunpack.c.l.b16 %v135
    %v408 = vunpack.c.h.b16 %v135
    %v409 = vunpack.c.l.b16 %v136
    %v410 = vunpack.c.h.b16 %v136
    %v411 = vunpack.c.l.b16 %v137
    %v412 = vunpack.c.h.b16 %v137
    %v413 = vunpack.c.l.b16 %v138
    %v414 = vunpack.c.h.b16 %v138
    %v415 = vunpack.c.l.b16 %v139
    %v416 = vunpack.c.h.b16 %v139
    %v417 = vunpack.c.l.b16 %v140
    %v418 = vunpack.c.h.b16 %v140
    %v419 = vpack.c.b16 %v261, %v259
    %v420 = vpack.c.b16 %v262, %v260
    %v421 = vpack.c.b16 %v265, %v263
    %v422 = vpack.c.b16 %v266, %v264
    %v423 = vpack.c.b16 %v269, %v267
    %v424 = vpack.c.b16 %v270, %v268
    %v425 = vpack.c.b16 %v273, %v271
    %v426 = vpack.c.b16 %v274, %v272
    %v427 = vpack.c.b16 %v277, %v275
    %v428 = vpack.c.b16 %v278, %v276
    %v429 = vpack.c.b16 %v281, %v279
    %v430 = vpack.c.b16 %v282, %v280
    %v431 = vpack.c.b16 %v285, %v283
    %v432 = vpack.c.b16 %v286, %v284
    %v433 = vpack.c.b16 %v289, %v287
    %v434 = vpack.c.b16 %v290, %v288
    %v435 = vpack.c.b16 %v293, %v291
    %v436 = vpack.c.b16 %v294, %v292
    %v437 = vpack.c.b16 %v297, %v295
    %v438 = vpack.c.b16 %v298, %v296
    %v439 = vpack.c.b16 %v301, %v299
    %v440 = vpack.c.b16 %v302, %v300
    %v441 = vpack.c.b16 %v305, %v303
    %v442 = vpack.c.b16 %v306, %v304
    %v443 = vpack.c.b16 %v309, %v307
    %v444 = vpack.c.b16 %v310, %v308
    %v445 = vpack.c.b16 %v313, %v311
    %v446 = vpack.c.b16 %v314, %v312
    %v447 = vpack.c.b16 %v317, %v315
    %v448 = vpack.c.b16 %v318, %v316
    %v449 = vpack.c.b16 %v321, %v319
    %v450 = vpack.c.b16 %v322, %v320
    %v451 = vpack.c.b16 %v325, %v323
    %v452 = vpack.c.b16 %v326, %v324
    %v453 = vpack.c.b16 %v329, %v327
    %v454 = vpack.c.b16 %v330, %v328
    %v455 = vpack.c.b16 %v333, %v331
    %v456 = vpack.c.b16 %v334, %v332
    %v457 = vpack.c.b16 %v337, %v335
    %v458 = vpack.c.b16 %v338, %v336
    %v459 = vpack.c.b16 %v341, %v339
    %v460 = vpack.c.b16 %v342, %v340
    %v461 = vpack.c.b16 %v345, %v343
    %v462 = vpack.c.b16 %v346, %v344
    %v463 = vpack.c.b16 %v349, %v347
    %v464 = vpack.c.b16 %v350, %v348
    %v465 = vpack.c.b16 %v353, %v351
    %v466 = vpack.c.b16 %v354, %v352
    %v467 = vpack.c.b16 %v357, %v355
    %v468 = vpack.c.b16 %v358, %v356
    %v469 = vpack.c.b16 %v361, %v359
    %v470 = vpack.c.b16 %v362, %v360
    %v471 = vpack.c.b16 %v365, %v363
    %v472 = vpack.c.b16 %v366, %v364
    %v473 = vpack.c.b16 %v369, %v367
    %v474 = vpack.c.b16 %v370, %v368
    %v475 = vpack.c.b16 %v373, %v371
    %v476 = vpack.c.b16 %v374, %v372
    %v477 = vpack.c.b16 %v377, %v375
    %v478 = vpack.c.b16 %v378, %v376
    %v479 = vpack.c.b16 %v381, %v379
    %v480 = vpack.c.b16 %v382, %v380
    %v481 = vpack.c.b16 %v385, %v383
    %v482 = vpack.c.b16 %v386, %v384
    %v483 = vpack.c.b16 %v389, %v387
    %v484 = vpack.c.b16 %v390, %v388
    %v485 = vpack.c.b16 %v393, %v391
    %v486 = vpack.c.b16 %v394, %v392
    %v487 = vpack.c.b16 %v397, %v395
    %v488 = vpack.c.b16 %v398, %v396
    %v489 = vpack.c.b16 %v401, %v399
    %v490 = vpack.c.b16 %v402, %v400
    %v491 = vpack.c.b16 %v405, %v403
    %v492 = vpack.c.b16 %v406, %v404
    %v493 = vpack.c.b16 %v409, %v407
    %v494 = vpack.c.b16 %v410, %v408
    %v495 = vpack.c.b16 %v413, %v411
    %v496 = vpack.c.b16 %v414, %v412
    %v497 = vpack.c.b16 %v417, %v415
    %v498 = vpack.c.b16 %v418, %v416
    %579 = vmatprep.subr.bf16.mxu0 %v420
    %580 = vmatpush1.bf16.msra.mxu0 %v419
    %581 = vmatprep.subr.bf16.mxu0 %v422
    %582 = vmatpush1.bf16.msra.mxu0 %v421
    %583 = vmatprep.subr.bf16.mxu0 %v424
    %584 = vmatpush1.bf16.msra.mxu0 %v423
    %585 = vmatprep.subr.bf16.mxu0 %v426
    %586 = vmatpush1.bf16.msra.mxu0 %v425
    %587 = vmatprep.subr.bf16.mxu0 %v428
    %588 = vmatpush1.bf16.msra.mxu0 %v427
    %589 = vmatprep.subr.bf16.mxu0 %v430
    %590 = vmatpush1.bf16.msra.mxu0 %v429
    %591 = vmatprep.subr.bf16.mxu0 %v432
    %592 = vmatpush1.bf16.msra.mxu0 %v431
    %593 = vmatprep.subr.bf16.mxu0 %v434
    %594 = vmatpush1.bf16.msra.mxu0 %v433
    %595 = vmatprep.subr.bf16.mxu0 %v436
    %596 = vmatpush1.bf16.msra.mxu0 %v435
    %597 = vmatprep.subr.bf16.mxu0 %v438
    %598 = vmatpush1.bf16.msra.mxu0 %v437
    %599 = vmatprep.subr.bf16.mxu0 %v440
    %600 = vmatpush1.bf16.msra.mxu0 %v439
    %601 = vmatprep.subr.bf16.mxu0 %v442
    %602 = vmatpush1.bf16.msra.mxu0 %v441
    %603 = vmatprep.subr.bf16.mxu0 %v444
    %604 = vmatpush1.bf16.msra.mxu0 %v443
    %605 = vmatprep.subr.bf16.mxu0 %v446
    %606 = vmatpush1.bf16.msra.mxu0 %v445
    %607 = vmatprep.subr.bf16.mxu0 %v448
    %608 = vmatpush1.bf16.msra.mxu0 %v447
    %609 = vmatprep.subr.bf16.mxu0 %v450
    %610 = vmatpush1.bf16.msra.mxu0 %v449
    %611 = vmatprep.mubr.bf16.mxu0 %v170
    %612 = vmatmul.mubr.bf16.gmra.mrb[0].mxu0 %v169
    %v613 = vpop.f32.mrb[0].mxu0
    %v614 = vadd.f32 %v146, %v613
    %v615 = vpop.f32.mrb[0].mxu0
    %v616 = vadd.f32 %v150, %v615
    %v617 = vpop.f32.mrb[0].mxu0
    %v618 = vadd.f32 %v146, %v617
    %v619 = vpop.f32.mrb[0].mxu0
    %v620 = vadd.f32 %v150, %v619
    %621 = vdwg.mxu0
    %622 = vmatprep.subr.bf16.mxu0 %v452
    %623 = vmatpush1.bf16.msra.mxu0 %v451
    %624 = vmatprep.subr.bf16.mxu0 %v454
    %625 = vmatpush1.bf16.msra.mxu0 %v453
    %626 = vmatprep.subr.bf16.mxu0 %v456
    %627 = vmatpush1.bf16.msra.mxu0 %v455
    %628 = vmatprep.subr.bf16.mxu0 %v458
    %629 = vmatpush1.bf16.msra.mxu0 %v457
    %630 = vmatprep.subr.bf16.mxu0 %v460
    %631 = vmatpush1.bf16.msra.mxu0 %v459
    %632 = vmatprep.subr.bf16.mxu0 %v462
    %633 = vmatpush1.bf16.msra.mxu0 %v461
    %634 = vmatprep.subr.bf16.mxu0 %v464
    %635 = vmatpush1.bf16.msra.mxu0 %v463
    %636 = vmatprep.subr.bf16.mxu0 %v466
    %637 = vmatpush1.bf16.msra.mxu0 %v465
    %638 = vmatprep.subr.bf16.mxu0 %v468
    %639 = vmatpush1.bf16.msra.mxu0 %v467
    %640 = vmatprep.subr.bf16.mxu0 %v470
    %641 = vmatpush1.bf16.msra.mxu0 %v469
    %642 = vmatprep.subr.bf16.mxu0 %v472
    %643 = vmatpush1.bf16.msra.mxu0 %v471
    %644 = vmatprep.subr.bf16.mxu0 %v474
    %645 = vmatpush1.bf16.msra.mxu0 %v473
    %646 = vmatprep.subr.bf16.mxu0 %v476
    %647 = vmatpush1.bf16.msra.mxu0 %v475
    %648 = vmatprep.subr.bf16.mxu0 %v478
    %649 = vmatpush1.bf16.msra.mxu0 %v477
    %650 = vmatprep.subr.bf16.mxu0 %v480
    %651 = vmatpush1.bf16.msra.mxu0 %v479
    %652 = vmatprep.subr.bf16.mxu0 %v482
    %653 = vmatpush1.bf16.msra.mxu0 %v481
    %654 = vmatprep.mubr.bf16.mxu0 %v172
    %655 = vmatmul.mubr.bf16.gmra.mrb[0].mxu0 %v171
    %v656 = vpop.f32.mrb[0].mxu0
    %v657 = vadd.f32 %v614, %v656
    %v658 = vpop.f32.mrb[0].mxu0
    %v659 = vadd.f32 %v616, %v658
    %v660 = vpop.f32.mrb[0].mxu0
    %v661 = vadd.f32 %v618, %v660
    %v662 = vpop.f32.mrb[0].mxu0
    %v663 = vadd.f32 %v620, %v662
    %664 = vdwg.mxu0
    %665 = vmatprep.subr.bf16.mxu0 %v484
    %666 = vmatpush1.bf16.msra.mxu0 %v483
    %667 = vmatprep.subr.bf16.mxu0 %v486
    %668 = vmatpush1.bf16.msra.mxu0 %v485
    %669 = vmatprep.subr.bf16.mxu0 %v488
    %670 = vmatpush1.bf16.msra.mxu0 %v487
    %671 = vmatprep.subr.bf16.mxu0 %v490
    %672 = vmatpush1.bf16.msra.mxu0 %v489
    %673 = vmatprep.subr.bf16.mxu0 %v492
    %674 = vmatpush1.bf16.msra.mxu0 %v491
    %675 = vmatprep.subr.bf16.mxu0 %v494
    %676 = vmatpush1.bf16.msra.mxu0 %v493
    %677 = vmatprep.subr.bf16.mxu0 %v496
    %678 = vmatpush1.bf16.msra.mxu0 %v495
    %679 = vmatprep.subr.bf16.mxu0 %v498
    %680 = vmatpush1.bf16.msra.mxu0 %v497
    %681 = vmatprep.subr.bf16.mxu0 0
    %682 = vmatpush1.bf16.msra.mxu0 0
    %683 = vmatprep.subr.bf16.mxu0 0
    %684 = vmatpush1.bf16.msra.mxu0 0
    %685 = vmatprep.subr.bf16.mxu0 0
    %686 = vmatpush1.bf16.msra.mxu0 0
    %687 = vmatprep.subr.bf16.mxu0 0
    %688 = vmatpush1.bf16.msra.mxu0 0
    %689 = vmatprep.subr.bf16.mxu0 0
    %690 = vmatpush1.bf16.msra.mxu0 0
    %691 = vmatprep.subr.bf16.mxu0 0
    %692 = vmatpush1.bf16.msra.mxu0 0
    %693 = vmatprep.subr.bf16.mxu0 0
    %694 = vmatpush1.bf16.msra.mxu0 0
    %695 = vmatprep.subr.bf16.mxu0 0
    %696 = vmatpush1.bf16.msra.mxu0 0
    %697 = vmatprep.mubr.bf16.mxu0 0
    %698 = vmatmul.mubr.bf16.gmra.mrb[0].mxu0 %v173
    %v699 = vpop.f32.mrb[0].mxu0
    %v700 = vadd.f32 %v657, %v699
    %v701 = vpop.f32.mrb[0].mxu0
    %v702 = vadd.f32 %v659, %v701
    %v703 = vpop.f32.mrb[0].mxu0
    %v704 = vadd.f32 %v661, %v703
    %v705 = vpop.f32.mrb[0].mxu0
    %v706 = vadd.f32 %v663, %v705
    %707 = vdwg.mxu0
    %v708 = vmax.f32 %v700, 0.0
    %v709 = vmax.f32 %v702, 0.0
    %v710 = vmax.f32 %v704, 0.0
    %v711 = vmax.f32 %v706, 0.0
    %v712 = vpack.c.bf16 %v710, %v708
    %v713 = vpack.c.bf16 %v711, %v709
    %v714 = vld [vmem:[#allocation4] sm:$0xf]
    %v715 = vld [vmem:[#allocation4 + $0x4] sm:$0xf]
    %v716 = vld [vmem:[#allocation4 + $0x8] sm:$0xf]
    %v717 = vld [vmem:[#allocation4 + $0xc] sm:$0xf]
    %v718 = vld [vmem:[#allocation4 + $0x10] sm:$0xf]
    %v719 = vld [vmem:[#allocation4 + $0x14] sm:$0xf]
    %v720 = vld [vmem:[#allocation4 + $0x18] sm:$0xf]
    %v721 = vld [vmem:[#allocation4 + $0x1c] sm:$0xf]
    %v722 = vld [vmem:[#allocation4 + $0x20] sm:$0xf]
    %v723 = vld [vmem:[#allocation4 + $0x24] sm:$0xf]
    %v724 = vld [vmem:[#allocation4 + $0x28] sm:$0xf]
    %v725 = vld [vmem:[#allocation4 + $0x2c] sm:$0xf]
    %v726 = vld [vmem:[#allocation4 + $0x30] sm:$0xf]
    %v727 = vld [vmem:[#allocation4 + $0x34] sm:$0xf]
    %v728 = vld [vmem:[#allocation4 + $0x38] sm:$0xf]
    %v729 = vld [vmem:[#allocation4 + $0x3c] sm:$0xf]
    %v730 = vld [vmem:[#allocation4 + $0x40] sm:$0xf]
    %v731 = vld [vmem:[#allocation4 + $0x44] sm:$0xf]
    %v732 = vld [vmem:[#allocation4 + $0x48] sm:$0xf]
    %v733 = vld [vmem:[#allocation4 + $0x4c] sm:$0xf]
    %v734 = vld [vmem:[#allocation4 + $0x50] sm:$0xf]
    %v735 = vld [vmem:[#allocation4 + $0x54] sm:$0xf]
    %v736 = vld [vmem:[#allocation4 + $0x58] sm:$0xf]
    %v737 = vld [vmem:[#allocation4 + $0x5c] sm:$0xf]
    %v738 = vld [vmem:[#allocation4 + $0x60] sm:$0xf]
    %v739 = vld [vmem:[#allocation4 + $0x64] sm:$0xf]
    %v740 = vld [vmem:[#allocation4 + $0x68] sm:$0xf]
    %v741 = vld [vmem:[#allocation4 + $0x6c] sm:$0xf]
    %v742 = vld [vmem:[#allocation4 + $0x70] sm:$0xf]
    %v743 = vld [vmem:[#allocation4 + $0x74] sm:$0xf]
    %v744 = vld [vmem:[#allocation4 + $0x78] sm:$0xf]
    %v745 = vld [vmem:[#allocation4 + $0x7c] sm:$0xf]
    %v746 = vld [vmem:[%s4] sm:$0x1]
    %v748 = vlaneseq
    %v749 = vshrl.u32 %v748, 7
    %v750 = vsub.s32 0, %v749
    %v751 = vrot.slane %v746, %v750
    %v785 = vunpack.c.l.b16 %v714
    %v786 = vunpack.c.l.b16 %v715
    %v787 = vunpack.c.l.b16 %v716
    %v788 = vunpack.c.l.b16 %v717
    %v789 = vunpack.c.l.b16 %v718
    %v790 = vunpack.c.l.b16 %v719
    %v791 = vunpack.c.l.b16 %v720
    %v792 = vunpack.c.l.b16 %v721
    %v793 = vunpack.c.l.b16 %v722
    %v794 = vunpack.c.l.b16 %v723
    %v795 = vunpack.c.l.b16 %v724
    %v796 = vunpack.c.l.b16 %v725
    %v797 = vunpack.c.l.b16 %v726
    %v798 = vunpack.c.l.b16 %v727
    %v799 = vunpack.c.l.b16 %v728
    %v800 = vunpack.c.l.b16 %v729
    %v801 = vunpack.c.l.b16 %v730
    %v802 = vunpack.c.l.b16 %v731
    %v803 = vunpack.c.l.b16 %v732
    %v804 = vunpack.c.l.b16 %v733
    %v805 = vunpack.c.l.b16 %v734
    %v806 = vunpack.c.l.b16 %v735
    %v807 = vunpack.c.l.b16 %v736
    %v808 = vunpack.c.l.b16 %v737
    %v809 = vunpack.c.l.b16 %v738
    %v810 = vunpack.c.l.b16 %v739
    %v811 = vunpack.c.l.b16 %v740
    %v812 = vunpack.c.l.b16 %v741
    %v813 = vunpack.c.l.b16 %v742
    %v814 = vunpack.c.l.b16 %v743
    %v815 = vunpack.c.l.b16 %v744
    %v816 = vunpack.c.l.b16 %v745
    %v817 = vpack.c.b16 %v786, %v785
    %v818 = vpack.c.b16 %v788, %v787
    %v819 = vpack.c.b16 %v790, %v789
    %v820 = vpack.c.b16 %v792, %v791
    %v821 = vpack.c.b16 %v794, %v793
    %v822 = vpack.c.b16 %v796, %v795
    %v823 = vpack.c.b16 %v798, %v797
    %v824 = vpack.c.b16 %v800, %v799
    %v825 = vpack.c.b16 %v802, %v801
    %v826 = vpack.c.b16 %v804, %v803
    %v827 = vpack.c.b16 %v806, %v805
    %v828 = vpack.c.b16 %v808, %v807
    %v829 = vpack.c.b16 %v810, %v809
    %v830 = vpack.c.b16 %v812, %v811
    %v831 = vpack.c.b16 %v814, %v813
    %v832 = vpack.c.b16 %v816, %v815
    %849 = vmatprep.subr.bf16.mxu0 0
    %850 = vmatpush1.bf16.msra.mxu0 %v817
    %851 = vmatprep.subr.bf16.mxu0 0
    %852 = vmatpush1.bf16.msra.mxu0 %v818
    %853 = vmatprep.subr.bf16.mxu0 0
    %854 = vmatpush1.bf16.msra.mxu0 %v819
    %855 = vmatprep.subr.bf16.mxu0 0
    %856 = vmatpush1.bf16.msra.mxu0 %v820
    %857 = vmatprep.subr.bf16.mxu0 0
    %858 = vmatpush1.bf16.msra.mxu0 %v821
    %859 = vmatprep.subr.bf16.mxu0 0
    %860 = vmatpush1.bf16.msra.mxu0 %v822
    %861 = vmatprep.subr.bf16.mxu0 0
    %862 = vmatpush1.bf16.msra.mxu0 %v823
    %863 = vmatprep.subr.bf16.mxu0 0
    %864 = vmatpush1.bf16.msra.mxu0 %v824
    %865 = vmatprep.subr.bf16.mxu0 0
    %866 = vmatpush1.bf16.msra.mxu0 %v825
    %867 = vmatprep.subr.bf16.mxu0 0
    %868 = vmatpush1.bf16.msra.mxu0 %v826
    %869 = vmatprep.subr.bf16.mxu0 0
    %870 = vmatpush1.bf16.msra.mxu0 %v827
    %871 = vmatprep.subr.bf16.mxu0 0
    %872 = vmatpush1.bf16.msra.mxu0 %v828
    %873 = vmatprep.subr.bf16.mxu0 0
    %874 = vmatpush1.bf16.msra.mxu0 %v829
    %875 = vmatprep.subr.bf16.mxu0 0
    %876 = vmatpush1.bf16.msra.mxu0 %v830
    %877 = vmatprep.subr.bf16.mxu0 0
    %878 = vmatpush1.bf16.msra.mxu0 %v831
    %879 = vmatprep.subr.bf16.mxu0 0
    %880 = vmatpush1.bf16.msra.mxu0 %v832
    %881 = vmatprep.mubr.bf16.mxu0 %v713
    %882 = vmatmul.mubr.bf16.gmra.mrb[0].mxu0 %v712
    %v883 = vpop.f32.mrb[0].mxu0
    %v884 = vadd.f32 %v751, %v883
    %v885 = vpop.f32.mrb[0].mxu0
    %v886 = vpop.f32.mrb[0].mxu0
    %v887 = vadd.f32 %v751, %v886
    %v888 = vpop.f32.mrb[0].mxu0
    %889 = vdwg.mxu0
    %v890 = vmax.f32 %v884, 0.0
    %v891 = vmax.f32 %v887, 0.0
    %v892 = vpack.c.bf16 %v891, %v890
    %v893 = vld [vmem:[%s5] sm:$0xf]
    %v894 = vld [vmem:[%s5 + $0x4] sm:$0xf]
    %v895 = vld [vmem:[%s5 + $0x8] sm:$0xf]
    %v896 = vld [vmem:[%s5 + $0xc] sm:$0xf]
    %v897 = vld [vmem:[%s5 + $0x10] sm:$0xf]
    %v898 = vld [vmem:[%s5 + $0x14] sm:$0xf]
    %v899 = vld [vmem:[%s5 + $0x18] sm:$0xf]
    %v900 = vld [vmem:[%s5 + $0x1c] sm:$0xf]
    %v901 = vld [vmem:[%s5 + $0x20] sm:$0xf]
    %v902 = vld [vmem:[%s5 + $0x24] sm:$0xf]
    %v903 = vld [vmem:[%s5 + $0x28] sm:$0xf]
    %v904 = vld [vmem:[%s5 + $0x2c] sm:$0xf]
    %v905 = vld [vmem:[%s5 + $0x30] sm:$0xf]
    %v906 = vld [vmem:[%s5 + $0x34] sm:$0xf]
    %v907 = vld [vmem:[%s5 + $0x38] sm:$0xf]
    %v908 = vld [vmem:[%s5 + $0x3c] sm:$0xf]
    %v909 = vld [vmem:[%s6] sm:$0x1]
    %v911 = vlaneseq
    %v912 = vshrl.u32 %v911, 7
    %v913 = vsub.s32 0, %v912
    %v914 = vrot.slane %v909, %v913
    %v932 = vunpack.c.l.b16 %v893
    %v933 = vunpack.c.l.b16 %v894
    %v934 = vunpack.c.l.b16 %v895
    %v935 = vunpack.c.l.b16 %v896
    %v936 = vunpack.c.l.b16 %v897
    %v937 = vunpack.c.l.b16 %v898
    %v938 = vunpack.c.l.b16 %v899
    %v939 = vunpack.c.l.b16 %v900
    %v940 = vunpack.c.l.b16 %v901
    %v941 = vunpack.c.l.b16 %v902
    %v942 = vunpack.c.l.b16 %v903
    %v943 = vunpack.c.l.b16 %v904
    %v944 = vunpack.c.l.b16 %v905
    %v945 = vunpack.c.l.b16 %v906
    %v946 = vunpack.c.l.b16 %v907
    %v947 = vunpack.c.l.b16 %v908
    %v948 = vpack.c.b16 %v933, %v932
    %v949 = vpack.c.b16 %v935, %v934
    %v950 = vpack.c.b16 %v937, %v936
    %v951 = vpack.c.b16 %v939, %v938
    %v952 = vpack.c.b16 %v941, %v940
    %v953 = vpack.c.b16 %v943, %v942
    %v954 = vpack.c.b16 %v945, %v944
    %v955 = vpack.c.b16 %v947, %v946
    %964 = vmatprep.subr.bf16.mxu0 0
    %965 = vmatpush1.bf16.msra.mxu0 %v948
    %966 = vmatprep.subr.bf16.mxu0 0
    %967 = vmatpush1.bf16.msra.mxu0 %v949
    %968 = vmatprep.subr.bf16.mxu0 0
    %969 = vmatpush1.bf16.msra.mxu0 %v950
    %970 = vmatprep.subr.bf16.mxu0 0
    %971 = vmatpush1.bf16.msra.mxu0 %v951
    %972 = vmatprep.subr.bf16.mxu0 0
    %973 = vmatpush1.bf16.msra.mxu0 %v952
    %974 = vmatprep.subr.bf16.mxu0 0
    %975 = vmatpush1.bf16.msra.mxu0 %v953
    %976 = vmatprep.subr.bf16.mxu0 0
    %977 = vmatpush1.bf16.msra.mxu0 %v954
    %978 = vmatprep.subr.bf16.mxu0 0
    %979 = vmatpush1.bf16.msra.mxu0 %v955
    %980 = vmatprep.subr.bf16.mxu0 0
    %981 = vmatpush1.bf16.msra.mxu0 0
    %982 = vmatprep.subr.bf16.mxu0 0
    %983 = vmatpush1.bf16.msra.mxu0 0
    %984 = vmatprep.subr.bf16.mxu0 0
    %985 = vmatpush1.bf16.msra.mxu0 0
    %986 = vmatprep.subr.bf16.mxu0 0
    %987 = vmatpush1.bf16.msra.mxu0 0
    %988 = vmatprep.subr.bf16.mxu0 0
    %989 = vmatpush1.bf16.msra.mxu0 0
    %990 = vmatprep.subr.bf16.mxu0 0
    %991 = vmatpush1.bf16.msra.mxu0 0
    %992 = vmatprep.subr.bf16.mxu0 0
    %993 = vmatpush1.bf16.msra.mxu0 0
    %994 = vmatprep.subr.bf16.mxu0 0
    %995 = vmatpush1.bf16.msra.mxu0 0
    %996 = vmatprep.mubr.bf16.mxu0 0
    %997 = vmatmul.mubr.bf16.gmra.mrb[0].mxu0 %v892
    %v998 = vpop.f32.mrb[0].mxu0
    %v999 = vadd.f32 %v914, %v998
    %v1000 = vpop.f32.mrb[0].mxu0
    %v1001 = vpop.f32.mrb[0].mxu0
    %v1002 = vadd.f32 %v914, %v1001
    %v1003 = vpop.f32.mrb[0].mxu0
    %1004 = vdwg.mxu0
    %vm1005 = vcmask 64512
    %1006 = vst.msk [vmem:[%s7] sm:$0xff] %vm1005, %v999
    %1007 = vst.msk [vmem:[%s7 + $0x8] sm:$0xff] %vm1005, %v1002
    // Predicated region
    $region38: #{tpu_custom_call.1} parent=1 // pred_check
      _
    $region39: #{tpu_custom_call.1} parent=1 // pred_check_branch
      %1009 = sbr.rel (0) target = $region41
    $region40: #{tpu_custom_call.1} parent=1 // pred_region
      _
    $region41: #{tpu_custom_call.1} parent=1 // pred_fallthru
      _
    // Predicated region
    $region42: #{tpu_custom_call.1} parent=1 // pred_check
      _
    $region43: #{tpu_custom_call.1} parent=1 // pred_check_branch
      %1011 = sbr.rel (0) target = $region45
    $region44: #{tpu_custom_call.1} parent=1 // pred_region
      _
    $region45: #{tpu_custom_call.1} parent=1 // pred_fallthru
      _
    %1012 = vsyncpa [#allocation3], 1
    %1013 = vsyncpa [#allocation5], 1

</llo_original>
